<compile_context>
chip_gen: v6e
topology: v6e:2x2x1
jax: 0.10.0
libtpu: 0.0.40
codegen_flags: <defaults>
</compile_context>

<pallas_src>
import functools

import jax
import jax.numpy as jnp
import numpy as np
from jax import lax
from jax.experimental import pallas as pl
from jax.experimental.pallas import tpu as pltpu

NEG_SLOPE = 0.01   # nn.LeakyReLU() default negative_slope


def _round_up(x, m):
    return (x + m - 1) // m * m


# ---------------------------------------------------------------------------
# Pallas kernel: fused (patches_bf16 @ weights_bf16) -> f32 + bias + LeakyReLU
# ---------------------------------------------------------------------------
def _gemm_bias_lrelu_kernel(p_ref, w_ref, b_ref, o_ref):
    acc = jnp.dot(p_ref[...], w_ref[...], preferred_element_type=jnp.float32)
    acc = acc + b_ref[...]                       # (1, Np) broadcasts over rows
    acc = jnp.where(acc >= 0.0, acc, NEG_SLOPE * acc)
    o_ref[...] = acc.astype(o_ref.dtype)


def _m_tiling(M):
    """Pick (Mp, TM).

    Large row tiles amortize the ~0.35us per-grid-step overhead; keep >= 2
    grid steps on the parallel axis whenever the problem allows so v7x's two
    TensorCores both get work.
    """
    Mp = _round_up(M, 16)            # multiple of 16 so Mp // 2 stays 8-aligned
    if Mp <= 16:
        return Mp, Mp                # tiny problem: single step
    tm = min(512, Mp // 2)
    Mp = _round_up(Mp, tm)
    return Mp, tm


def _vmem_limit_bytes(tm, kp, npad, out_itemsize):
    # Rough double-buffered footprint: bf16 patch + weight tiles, f32 bias,
    # output tile.  Only raise the scoped-VMEM cap when tiles actually grow
    # (v6e default scoped limit is 32 MiB); cap at 64 MiB so v7x stays legal.
    need = 2 * (tm * kp * 2 + kp * npad * 2 + npad * 4 + tm * npad * out_itemsize)
    if need <= 24 * 1024 * 1024:
        return None
    return min(2 * need, 64 * 1024 * 1024)


# ---------------------------------------------------------------------------
# One LogConv (Conv2d, padding=2) + LeakyReLU layer, NHWC in / NHWC out.
# Weights arrive pre-packed (bf16, (Kp, Np)) from __init__.
# ---------------------------------------------------------------------------
def _conv_lrelu_layer(x, w_pad, b_pad, kh, kw, stride, padding, n_out, out_dtype):
    B, H, W, C = x.shape
    xp = jnp.pad(x, ((0, 0), (padding, padding), (padding, padding), (0, 0)))
    Ho = (H + 2 * padding - kh) // stride + 1
    Wo = (W + 2 * padding - kw) // stride + 1

    # im2col in NHWC (no transposes): K ordering is (kh, kw, c), matching the
    # cached weight flattening.
    cols = []
    for i in range(kh):
        for j in range(kw):
            cols.append(xp[:, i:i + stride * (Ho - 1) + 1:stride,
                           j:j + stride * (Wo - 1) + 1:stride, :])
    col = jnp.stack(cols, axis=3).reshape(B * Ho * Wo, kh * kw * C)   # bf16

    M, K = col.shape
    Kp, Np = w_pad.shape
    Mp, TM = _m_tiling(M)
    p_pad = jnp.pad(col, ((0, Mp - M), (0, Kp - K)))                  # bf16

    out = pl.pallas_call(
        _gemm_bias_lrelu_kernel,
        out_shape=jax.ShapeDtypeStruct((Mp, Np), out_dtype),
        grid=(Mp // TM,),
        in_specs=[
            pl.BlockSpec((TM, Kp), lambda i: (i, 0)),
            pl.BlockSpec((Kp, Np), lambda i: (0, 0)),
            pl.BlockSpec((1, Np), lambda i: (0, 0)),
        ],
        out_specs=pl.BlockSpec((TM, Np), lambda i: (i, 0)),
        compiler_params=pltpu.CompilerParams(
            dimension_semantics=("parallel",),
            vmem_limit_bytes=_vmem_limit_bytes(
                TM, Kp, Np, jnp.dtype(out_dtype).itemsize)),
    )(p_pad, w_pad, b_pad)

    return out[:M, :n_out].reshape(B, Ho, Wo, n_out)                  # NHWC


# ---------------------------------------------------------------------------
# Whole forward pass (jitted once): NCHW f32 in -> NCHW f32 out.
# ---------------------------------------------------------------------------
@functools.partial(jax.jit, static_argnames=("meta",))
def _forward_nchw(x, packed, meta):
    # Single NCHW -> NHWC transpose + bf16 cast at entry.
    x = x.transpose(0, 2, 3, 1).astype(jnp.bfloat16)
    n_layers = len(meta)
    for idx, ((w_pad, b_pad), (kh, kw, stride, padding, c_out)) in enumerate(
            zip(packed, meta)):
        out_dtype = jnp.float32 if idx == n_layers - 1 else jnp.bfloat16
        x = _conv_lrelu_layer(x, w_pad, b_pad, kh, kw, stride, padding,
                              c_out, out_dtype)
    # Single NHWC -> NCHW transpose at exit.
    return x.transpose(0, 3, 1, 2).astype(jnp.float32)


def _pack_layer_weights(w, b):
    """OIHW f32 weight -> bf16 (Kp, Np) GEMM matrix; bias -> f32 (1, Np)."""
    O, C, KH, KW = w.shape
    K = C * KH * KW
    Kp = _round_up(K, 128)
    Np = _round_up(O, 128)
    w_mat = jnp.transpose(w, (2, 3, 1, 0)).reshape(K, O)   # (kh, kw, c) x O
    w_pad = jnp.pad(w_mat, ((0, Kp - K), (0, Np - O))).astype(jnp.bfloat16)
    b_pad = jnp.pad(b, (0, Np - O)).reshape(1, Np).astype(jnp.float32)
    return w_pad, b_pad


# ---------------------------------------------------------------------------
# DiscriminatorLogConv: deterministic parameter init + forward
# ---------------------------------------------------------------------------
class DiscriminatorLogConv:
    def __init__(self, params, in_shape, key):
        self._params = params
        self._in_shape = in_shape
        self.layers = []          # raw (weight OIHW f32, bias f32, stride)
        packed = []
        meta = []

        curr_channel_count = params["data_size"] - 1
        log_size = in_shape[1]
        for nfilters, kernel_shape, stride in zip(
                params["nfilter"], params["shape"], params["stride"]):
            key, kw_, kb_ = jax.random.split(key, 3)
            fan_in = curr_channel_count * kernel_shape * kernel_shape
            w = jax.random.normal(
                kw_, (nfilters, curr_channel_count, kernel_shape, kernel_shape),
                jnp.float32) * (1.0 / np.sqrt(fan_in))
            b = jax.random.normal(kb_, (nfilters,), jnp.float32) * 0.01
            self.layers.append((w, b, stride))
            packed.append(_pack_layer_weights(w, b))     # cached once
            meta.append((kernel_shape, kernel_shape, stride, 2, nfilters))
            log_size = log_size / stride
            curr_channel_count = nfilters

        self._packed = tuple(packed)
        self._meta = tuple(meta)

    def forward_conv(self, x):
        return _forward_nchw(x, self._packed, meta=self._meta)

    def forward(self, x):
        return self.forward_conv(x)


# ---------------------------------------------------------------------------
# Pure-JAX reference (lax.conv) mirroring the bf16 datapath for a silent check
# ---------------------------------------------------------------------------
def _reference_forward(x_nchw, layers):
    x = x_nchw.astype(jnp.bfloat16)
    n = len(layers)
    for idx, (w, b, stride) in enumerate(layers):
        y = lax.conv_general_dilated(
            x, w.astype(jnp.bfloat16),
            window_strides=(stride, stride),
            padding=[(2, 2), (2, 2)],
            dimension_numbers=("NCHW", "OIHW", "NCHW"),
            preferred_element_type=jnp.float32)
        y = y + b[None, :, None, None]
        y = jnp.where(y >= 0.0, y, NEG_SLOPE * y)
        x = y.astype(jnp.bfloat16) if idx < n - 1 else y
    return x


if __name__ == "__main__":
    params = {
        "data_size": 5,          # -> in_channels = 4
        "nfilter": [8, 16],
        "shape": [5, 5],
        "stride": [2, 2],
    }
    in_shape = (4, 16, 16)       # (C, H, W); in_shape[1] = 16
    batch = 2

    key = jax.random.PRNGKey(0)
    key, kx = jax.random.split(key)
    x = jax.random.normal(kx, (batch,) + in_shape, jnp.float32)

    model = DiscriminatorLogConv(params, in_shape, key)

    y = jax.block_until_ready(model.forward(x))

    # Silent numerical check against the pure-JAX (lax.conv) reference.
    y_ref = jax.block_until_ready(_reference_forward(x, model.layers))
    assert y.shape == y_ref.shape == (batch, 16, 4, 4)
    np.testing.assert_allclose(np.asarray(y, np.float32),
                               np.asarray(y_ref, np.float32),
                               rtol=2e-2, atol=2e-2)

    print("KERNEL_OK")
</pallas_src>

<mosaic_0001>
module attributes {stable_mosaic.version = 11 : i64} {
  func.func @_gemm_bias_lrelu_kernel(%arg0: i32, %arg1: memref<64x128xbf16, #tpu.memory_space<vmem>>, %arg2: memref<128x128xbf16, #tpu.memory_space<vmem>>, %arg3: memref<1x128xf32, #tpu.memory_space<vmem>>, %arg4: memref<64x128xbf16, #tpu.memory_space<vmem>>) attributes {dimension_semantics = [#tpu.dimension_semantics<parallel>], iteration_bounds = array<i64: 2>, scalar_prefetch = 0 : i64, scratch_operands = 0 : i64, tpu.core_type = #tpu.core_type<tc>, window_params = [{transform_indices = @transform_0, window_bounds = array<i64: 64, 128>}, {pipeline_mode = #tpu.pipeline_mode<synchronous>, transform_indices = @transform_1, window_bounds = array<i64: 128, 128>}, {pipeline_mode = #tpu.pipeline_mode<synchronous>, transform_indices = @transform_2, window_bounds = array<i64: 1, 128>}, {transform_indices = @transform_3, window_bounds = array<i64: 64, 128>}]} {
    %c0 = arith.constant 0 : index
    %c0_0 = arith.constant 0 : index
    %0 = vector.load %arg1[%c0, %c0_0] : memref<64x128xbf16, #tpu.memory_space<vmem>>, vector<64x128xbf16>
    %c0_1 = arith.constant 0 : index
    %c0_2 = arith.constant 0 : index
    %1 = vector.load %arg2[%c0_1, %c0_2] : memref<128x128xbf16, #tpu.memory_space<vmem>>, vector<128x128xbf16>
    %cst = arith.constant dense<0.000000e+00> : vector<64x128xf32>
    %2 = tpu.matmul %0, %1, %cst {dimension_numbers = #tpu.dot_dimension_numbers<[1], [0], [0], [1], [0, 0, 1, 1], [], []>} : vector<64x128xbf16>, vector<128x128xbf16>, vector<64x128xf32> -> vector<64x128xf32>
    %c0_3 = arith.constant 0 : index
    %c0_4 = arith.constant 0 : index
    %3 = vector.load %arg3[%c0_3, %c0_4] : memref<1x128xf32, #tpu.memory_space<vmem>>, vector<1x128xf32>
    %4 = vector.broadcast %3 : vector<1x128xf32> to vector<64x128xf32>
    %5 = arith.addf %2, %4 : vector<64x128xf32>
    %cst_5 = arith.constant 0.000000e+00 : f32
    %6 = vector.broadcast %cst_5 : f32 to vector<64x128xf32>
    %7 = arith.cmpf oge, %5, %6 : vector<64x128xf32>
    %cst_6 = arith.constant 0.00999999977 : f32
    %8 = vector.broadcast %cst_6 : f32 to vector<64x128xf32>
    %9 = arith.mulf %8, %5 : vector<64x128xf32>
    %10 = arith.select %7, %5, %9 : vector<64x128xi1>, vector<64x128xf32>
    %11 = arith.truncf %10 : vector<64x128xf32> to vector<64x128xbf16>
    %c0_7 = arith.constant 0 : index
    %c0_8 = arith.constant 0 : index
    %12 = vector.load %arg4[%c0_7, %c0_8] : memref<64x128xbf16, #tpu.memory_space<vmem>>, vector<64x128xbf16>
    tpu.vector_store %arg4[%c0_7, %c0_8], %11 {strides = array<i32>} : memref<64x128xbf16, #tpu.memory_space<vmem>>, vector<64x128xbf16>,
    return
  }
  func.func @transform_0(%arg0: i32) -> (i32, i32) {
    %c0_i32 = arith.constant 0 : i32
    %c0_i32_0 = arith.constant 0 : i32
    return %arg0, %c0_i32 : i32, i32
  }
  func.func @transform_1(%arg0: i32) -> (i32, i32) {
    %c0_i32 = arith.constant 0 : i32
    %c0_i32_0 = arith.constant 0 : i32
    %c0_i32_1 = arith.constant 0 : i32
    return %c0_i32, %c0_i32_0 : i32, i32
  }
  func.func @transform_2(%arg0: i32) -> (i32, i32) {
    %c0_i32 = arith.constant 0 : i32
    %c0_i32_0 = arith.constant 0 : i32
    %c0_i32_1 = arith.constant 0 : i32
    return %c0_i32, %c0_i32_0 : i32, i32
  }
  func.func @transform_3(%arg0: i32) -> (i32, i32) {
    %c0_i32 = arith.constant 0 : i32
    %c0_i32_0 = arith.constant 0 : i32
    return %arg0, %c0_i32 : i32, i32
  }
}

module attributes {stable_mosaic.version = 11 : i64} {
  func.func @_gemm_bias_lrelu_kernel(%arg0: i32, %arg1: memref<16x256xbf16, #tpu.memory_space<vmem>>, %arg2: memref<256x128xbf16, #tpu.memory_space<vmem>>, %arg3: memref<1x128xf32, #tpu.memory_space<vmem>>, %arg4: memref<16x128xf32, #tpu.memory_space<vmem>>) attributes {dimension_semantics = [#tpu.dimension_semantics<parallel>], iteration_bounds = array<i64: 2>, scalar_prefetch = 0 : i64, scratch_operands = 0 : i64, tpu.core_type = #tpu.core_type<tc>, window_params = [{transform_indices = @transform_0, window_bounds = array<i64: 16, 256>}, {pipeline_mode = #tpu.pipeline_mode<synchronous>, transform_indices = @transform_1, window_bounds = array<i64: 256, 128>}, {pipeline_mode = #tpu.pipeline_mode<synchronous>, transform_indices = @transform_2, window_bounds = array<i64: 1, 128>}, {transform_indices = @transform_3, window_bounds = array<i64: 16, 128>}]} {
    %c0 = arith.constant 0 : index
    %c0_0 = arith.constant 0 : index
    %0 = vector.load %arg1[%c0, %c0_0] : memref<16x256xbf16, #tpu.memory_space<vmem>>, vector<16x256xbf16>
    %c0_1 = arith.constant 0 : index
    %c0_2 = arith.constant 0 : index
    %1 = vector.load %arg2[%c0_1, %c0_2] : memref<256x128xbf16, #tpu.memory_space<vmem>>, vector<256x128xbf16>
    %cst = arith.constant dense<0.000000e+00> : vector<16x128xf32>
    %2 = tpu.matmul %0, %1, %cst {dimension_numbers = #tpu.dot_dimension_numbers<[1], [0], [0], [1], [0, 0, 1, 1], [], []>} : vector<16x256xbf16>, vector<256x128xbf16>, vector<16x128xf32> -> vector<16x128xf32>
    %c0_3 = arith.constant 0 : index
    %c0_4 = arith.constant 0 : index
    %3 = vector.load %arg3[%c0_3, %c0_4] : memref<1x128xf32, #tpu.memory_space<vmem>>, vector<1x128xf32>
    %4 = vector.broadcast %3 : vector<1x128xf32> to vector<16x128xf32>
    %5 = arith.addf %2, %4 : vector<16x128xf32>
    %cst_5 = arith.constant 0.000000e+00 : f32
    %6 = vector.broadcast %cst_5 : f32 to vector<16x128xf32>
    %7 = arith.cmpf oge, %5, %6 : vector<16x128xf32>
    %cst_6 = arith.constant 0.00999999977 : f32
    %8 = vector.broadcast %cst_6 : f32 to vector<16x128xf32>
    %9 = arith.mulf %8, %5 : vector<16x128xf32>
    %10 = arith.select %7, %5, %9 : vector<16x128xi1>, vector<16x128xf32>
    %c0_7 = arith.constant 0 : index
    %c0_8 = arith.constant 0 : index
    %11 = vector.load %arg4[%c0_7, %c0_8] : memref<16x128xf32, #tpu.memory_space<vmem>>, vector<16x128xf32>
    tpu.vector_store %arg4[%c0_7, %c0_8], %10 {strides = array<i32>} : memref<16x128xf32, #tpu.memory_space<vmem>>, vector<16x128xf32>,
    return
  }
  func.func @transform_0(%arg0: i32) -> (i32, i32) {
    %c0_i32 = arith.constant 0 : i32
    %c0_i32_0 = arith.constant 0 : i32
    return %arg0, %c0_i32 : i32, i32
  }
  func.func @transform_1(%arg0: i32) -> (i32, i32) {
    %c0_i32 = arith.constant 0 : i32
    %c0_i32_0 = arith.constant 0 : i32
    %c0_i32_1 = arith.constant 0 : i32
    return %c0_i32, %c0_i32_0 : i32, i32
  }
  func.func @transform_2(%arg0: i32) -> (i32, i32) {
    %c0_i32 = arith.constant 0 : i32
    %c0_i32_0 = arith.constant 0 : i32
    %c0_i32_1 = arith.constant 0 : i32
    return %c0_i32, %c0_i32_0 : i32, i32
  }
  func.func @transform_3(%arg0: i32) -> (i32, i32) {
    %c0_i32 = arith.constant 0 : i32
    %c0_i32_0 = arith.constant 0 : i32
    return %arg0, %c0_i32 : i32, i32
  }
}

</mosaic_0001>

<llo_original>
// kernel: _forward_nchw.2
$region0: #{_forward_nchw.2}
  #allocation0 [shape = 'u32[]', space=smem, size = 0x4, offset = 0x4, fixed_abs, tag = 'smem constant byte address 0x4 - core index']
  #allocation1 [shape = 'u32[144,128]{1,0:T(1,128)}', space=vmem, size = 0x12000, scoped, tag = 'internal scratch']
  %s0 = inlined_call_operand.vmem [shape: bf16[128,128], index: 0, kind: input, shape index: {}]
  %s1 = inlined_call_operand.vmem [shape: bf16[128,128], index: 1, kind: input, shape index: {}]
  %s2 = inlined_call_operand.vmem [shape: f32[1,128], index: 2, kind: input, shape index: {}]
  %s3 = inlined_call_operand.vmem [shape: bf16[128,128], index: 3, kind: output, shape index: {}]
  %s4 = sld [smem:[#allocation0]]
  $region45: #{_forward_nchw.2} parent=0
    _
  %s6 = ssub.s32 1, %s4
  %s7 = scalar_select 0, %s6, %s4
  loop: start=0, step=1, limit=4
  $region2: #{_forward_nchw.2} parent=0 // loop_pre_header
    _
  $region3: #{_forward_nchw.2} parent=0 // loop_header
    %s9 = sphi 0, %s13
    %p10 = scmp.ge.s32.totalorder %s9, 4
    %s19 = sphi 0, %s21
    %s22 = sphi 0, %s19
    %s23 = sphi 0, %s22
    %s39 = sphi 0, %s23
    %s43 = sphi 0, %s43
    %s45 = sphi 0, %s43
    %s46 = sphi 0, %s45
    %s60 = sphi 0, %s46
    %s64 = sphi 0, %s64
    %s66 = sphi 0, %s64
    %s67 = sphi 0, %s66
    %s81 = sphi 0, %s67
    %s87 = sphi 0, %s89
    %s90 = sphi 0, %s87
    %s91 = sphi 0, %s90
    %s107 = sphi 0, %s91
  $region4: #{_forward_nchw.2} parent=0 // loop_header_branch
    %12 = sbr.rel (%p10) target = $region8
  $region5: #{_forward_nchw.2} parent=0 // loop_body
    %s14 = ssub.s32 %s9, 1
    %s15 = ssub.s32 %s9, 2
    %s16 = sadd.s32 %s9, 1
    %s17 = ssub.s32 %s9, %s16
    %p18 = scmp.eq.s32.totalorder %s17, 0
    %s20 = sadd.s32 %s19, 1
    %s21 = scalar_select %p18, %s19, %s20
    %p24 = pneg %p18
    %p25 = scmp.eq.s32.totalorder %s9, 1
    %p26 = por %p24, %p25
    %p27 = scmp.ne.s32.totalorder %s19, %s22
    %p28 = scmp.eq.s32.totalorder %s9, 0
    %p29 = por %p27, %p28
    %p30 = scmp.ne.s32.totalorder %s19, %s22
    %p31 = scmp.eq.s32.totalorder %s14, 1
    %p32 = por %p30, %p31
    %p33 = scmp.ne.s32.totalorder %s22, %s23
    %p34 = scmp.eq.s32.totalorder %s14, 0
    %p35 = por %p33, %p34
    %p36 = scmp.ne.s32.totalorder %s22, %s23
    %p37 = scmp.eq.s32.totalorder %s15, 1
    %p38 = por %p36, %p37
    %p40 = scmp.ne.s32.totalorder %s23, %s39
    %p41 = scmp.eq.s32.totalorder %s15, 0
    %p42 = por %p40, %p41
    %s44 = sadd.s32 %s43, 1
    %p47 = scmp.eq.s32.totalorder %s9, 1
    %p48 = scmp.ne.s32.totalorder %s43, %s45
    %p49 = scmp.eq.s32.totalorder %s9, 0
    %p50 = por %p48, %p49
    %p51 = scmp.ne.s32.totalorder %s43, %s45
    %p52 = scmp.eq.s32.totalorder %s14, 1
    %p53 = por %p51, %p52
    %p54 = scmp.ne.s32.totalorder %s45, %s46
    %p55 = scmp.eq.s32.totalorder %s14, 0
    %p56 = por %p54, %p55
    %p57 = scmp.ne.s32.totalorder %s45, %s46
    %p58 = scmp.eq.s32.totalorder %s15, 1
    %p59 = por %p57, %p58
    %p61 = scmp.ne.s32.totalorder %s46, %s60
    %p62 = scmp.eq.s32.totalorder %s15, 0
    %p63 = por %p61, %p62
    %s65 = sadd.s32 %s64, 1
    %p68 = scmp.eq.s32.totalorder %s9, 1
    %p69 = scmp.ne.s32.totalorder %s64, %s66
    %p70 = scmp.eq.s32.totalorder %s9, 0
    %p71 = por %p69, %p70
    %p72 = scmp.ne.s32.totalorder %s64, %s66
    %p73 = scmp.eq.s32.totalorder %s14, 1
    %p74 = por %p72, %p73
    %p75 = scmp.ne.s32.totalorder %s66, %s67
    %p76 = scmp.eq.s32.totalorder %s14, 0
    %p77 = por %p75, %p76
    %p78 = scmp.ne.s32.totalorder %s66, %s67
    %p79 = scmp.eq.s32.totalorder %s15, 1
    %p80 = por %p78, %p79
    %p82 = scmp.ne.s32.totalorder %s67, %s81
    %p83 = scmp.eq.s32.totalorder %s15, 0
    %p84 = por %p82, %p83
    %s85 = ssub.s32 %s9, %s16
    %p86 = scmp.eq.s32.totalorder %s85, 0
    %s88 = sadd.s32 %s87, 1
    %s89 = scalar_select %p86, %s87, %s88
    %p92 = pneg %p86
    %p93 = scmp.eq.s32.totalorder %s9, 1
    %p94 = por %p92, %p93
    %p95 = scmp.ne.s32.totalorder %s87, %s90
    %p96 = scmp.eq.s32.totalorder %s9, 0
    %p97 = por %p95, %p96
    %p98 = scmp.ne.s32.totalorder %s87, %s90
    %p99 = scmp.eq.s32.totalorder %s14, 1
    %p100 = por %p98, %p99
    %p101 = scmp.ne.s32.totalorder %s90, %s91
    %p102 = scmp.eq.s32.totalorder %s14, 0
    %p103 = por %p101, %p102
    %p104 = scmp.ne.s32.totalorder %s90, %s91
    %p105 = scmp.eq.s32.totalorder %s15, 1
    %p106 = por %p104, %p105
    %p108 = scmp.ne.s32.totalorder %s91, %s107
    %p109 = scmp.eq.s32.totalorder %s15, 0
    %p110 = por %p108, %p109
    %p111 = scmp.le.s32.totalorder 1, %s9
    %p112 = scmp.lt.s32.totalorder %s9, 3
    %p113 = pnand %p111, %p112
    %p114 = pneg %p113
    // Predicated region
    $region9: #{_forward_nchw.2} parent=5 // pred_check
      _
    $region10: #{_forward_nchw.2} parent=5 // pred_check_branch
      %116 = sbr.rel (%p113) target = $region12
    $region11: #{_forward_nchw.2} parent=5 // pred_region
      %s117 = ssub.s32 %s9, 1
      // Predicated region
      $region13: #{_forward_nchw.2} parent=11 // pred_check
        %p118 = pneg %p56
      $region14: #{_forward_nchw.2} parent=11 // pred_check_branch
        %120 = sbr.rel (%p118) target = $region16
      $region15: #{_forward_nchw.2} parent=11 // pred_region
        _
      $region16: #{_forward_nchw.2} parent=11 // pred_fallthru
        _
      // Predicated region
      $region17: #{_forward_nchw.2} parent=11 // pred_check
        %p121 = pneg %p77
      $region18: #{_forward_nchw.2} parent=11 // pred_check_branch
        %123 = sbr.rel (%p121) target = $region20
      $region19: #{_forward_nchw.2} parent=11 // pred_region
        _
      $region20: #{_forward_nchw.2} parent=11 // pred_fallthru
        _
    $region12: #{_forward_nchw.2} parent=5 // pred_fallthru
      _
    %p124 = scmp.lt.s32.totalorder %s9, 2
    // Predicated region
    $region21: #{_forward_nchw.2} parent=5 // pred_check
      %p125 = pneg %p124
    $region22: #{_forward_nchw.2} parent=5 // pred_check_branch
      %127 = sbr.rel (%p125) target = $region24
    $region23: #{_forward_nchw.2} parent=5 // pred_region
      // Predicated region
      $region25: #{_forward_nchw.2} parent=23 // pred_check
        %p128 = pneg %p29
      $region26: #{_forward_nchw.2} parent=23 // pred_check_branch
        %130 = sbr.rel (%p128) target = $region28
      $region27: #{_forward_nchw.2} parent=23 // pred_region
        %s131 = smul.u32 8, %s9
        %p132 = scmp.lt.s32.totalorder %s131, 15
        %s133 = scalar_select %p132, %s131, 15
        %s134 = smul.addr %s133, 4
        %s135 = scalar_lea.vmem %s0, %s134
        %s136 = smul.u32 8, %s9
      $region28: #{_forward_nchw.2} parent=23 // pred_fallthru
        _
    $region24: #{_forward_nchw.2} parent=5 // pred_fallthru
      _
    %p137 = scmp.le.s32.totalorder 1, %s9
    %p138 = scmp.lt.s32.totalorder %s9, 3
    %p139 = pnand %p137, %p138
    %p140 = pneg %p139
    // Predicated region
    $region29: #{_forward_nchw.2} parent=5 // pred_check
      _
    $region30: #{_forward_nchw.2} parent=5 // pred_check_branch
      %142 = sbr.rel (%p139) target = $region32
    $region31: #{_forward_nchw.2} parent=5 // pred_region
      %s143 = ssub.s32 %s9, 1
      %s144 = smul.u32 8, %s14
      %p145 = scmp.lt.s32.totalorder %s144, 15
      %s146 = scalar_select %p145, %s144, 15
      %s147 = smul.addr %s146, 4
      %s148 = scalar_lea.vmem %s0, %s147
      %p149 = pneg %p35
      %p150 = pneg %p32
      %p151 = pneg %p56
      %p152 = pneg %p53
      %p153 = pneg %p77
      %p154 = pneg %p74
      %p155 = pneg %p103
      %p156 = pneg %p100
      %s157 = smul.u32 8, %s14
      %p158 = scmp.lt.s32.totalorder %s157, 15
      %s159 = scalar_select %p158, %s157, 15
      %s160 = smul.addr %s159, 4
      %s161 = scalar_lea.vmem %s3, %s160
      %s162 = smul.u32 8, %s14
      %p163 = scmp.lt.s32.totalorder %s162, 15
      %s164 = scalar_select %p163, %s162, 15
      %s165 = smul.addr %s164, 4
      %s166 = scalar_lea.vmem %s0, %s165
      %s167 = smul.u32 8, %s14
      %s168 = smul.u32 8, %s14
      %p169 = scmp.lt.s32.totalorder %s168, 15
      %s170 = scalar_select %p169, %s168, 15
      %s171 = smul.addr %s170, 4
      %s172 = scalar_lea.vmem %s3, %s171
      %s173 = smul.u32 8, %s14
      %v175 = vld [vmem:[%s166] sm:$0xf]
      %v176 = vld [vmem:[%s166 + $0x4] sm:$0xf]
      %v177 = vld [vmem:[%s166 + $0x8] sm:$0xf]
      %v178 = vld [vmem:[%s166 + $0xc] sm:$0xf]
      %v179 = vld [vmem:[%s166 + $0x10] sm:$0xf]
      %v180 = vld [vmem:[%s166 + $0x14] sm:$0xf]
      %v181 = vld [vmem:[%s166 + $0x18] sm:$0xf]
      %v182 = vld [vmem:[%s166 + $0x1c] sm:$0xf]
      %v183 = vld [vmem:[%s1] sm:$0xf]
      %v184 = vld [vmem:[%s1 + $0x4] sm:$0xf]
      %v185 = vld [vmem:[%s1 + $0x8] sm:$0xf]
      %v186 = vld [vmem:[%s1 + $0xc] sm:$0xf]
      %v187 = vld [vmem:[%s1 + $0x10] sm:$0xf]
      %v188 = vld [vmem:[%s1 + $0x14] sm:$0xf]
      %v189 = vld [vmem:[%s1 + $0x18] sm:$0xf]
      %v190 = vld [vmem:[%s1 + $0x1c] sm:$0xf]
      %v191 = vld [vmem:[%s1 + $0x20] sm:$0xf]
      %v192 = vld [vmem:[%s1 + $0x24] sm:$0xf]
      %v193 = vld [vmem:[%s1 + $0x28] sm:$0xf]
      %v194 = vld [vmem:[%s1 + $0x2c] sm:$0xf]
      %v195 = vld [vmem:[%s1 + $0x30] sm:$0xf]
      %v196 = vld [vmem:[%s1 + $0x34] sm:$0xf]
      %v197 = vld [vmem:[%s1 + $0x38] sm:$0xf]
      %v198 = vld [vmem:[%s1 + $0x3c] sm:$0xf]
      %v199 = vld [vmem:[%s2] sm:$0x1]
      %v201 = vlaneseq
      %v202 = vshrl.u32 %v201, 7
      %v203 = vsub.s32 0, %v202
      %v204 = vrot.slane %v199, %v203
      %v214 = vunpack.c.l.b16 %v175
      %v215 = vunpack.c.l.b16 %v176
      %v216 = vunpack.c.l.b16 %v177
      %v217 = vunpack.c.l.b16 %v178
      %v218 = vunpack.c.l.b16 %v179
      %v219 = vunpack.c.l.b16 %v180
      %v220 = vunpack.c.l.b16 %v181
      %v221 = vunpack.c.l.b16 %v182
      %v222 = vpack.c.b16 %v215, %v214
      %v223 = vpack.c.b16 %v217, %v216
      %v224 = vpack.c.b16 %v219, %v218
      %v225 = vpack.c.b16 %v221, %v220
      %v246 = vunpack.c.l.b16 %v183
      %v247 = vunpack.c.l.b16 %v184
      %v248 = vunpack.c.l.b16 %v185
      %v249 = vunpack.c.l.b16 %v186
      %v250 = vunpack.c.l.b16 %v187
      %v251 = vunpack.c.l.b16 %v188
      %v252 = vunpack.c.l.b16 %v189
      %v253 = vunpack.c.l.b16 %v190
      %v254 = vunpack.c.l.b16 %v191
      %v255 = vunpack.c.l.b16 %v192
      %v256 = vunpack.c.l.b16 %v193
      %v257 = vunpack.c.l.b16 %v194
      %v258 = vunpack.c.l.b16 %v195
      %v259 = vunpack.c.l.b16 %v196
      %v260 = vunpack.c.l.b16 %v197
      %v261 = vunpack.c.l.b16 %v198
      %v262 = vpack.c.b16 %v247, %v246
      %v263 = vpack.c.b16 %v249, %v248
      %v264 = vpack.c.b16 %v251, %v250
      %v265 = vpack.c.b16 %v253, %v252
      %v266 = vpack.c.b16 %v255, %v254
      %v267 = vpack.c.b16 %v257, %v256
      %v268 = vpack.c.b16 %v259, %v258
      %v269 = vpack.c.b16 %v261, %v260
      %278 = vmatprep.subr.bf16.mxu0 0
      %279 = vmatpush1.bf16.msra.mxu0 %v269
      %280 = vmatprep.subr.bf16.mxu0 0
      %281 = vmatpush1.bf16.msra.mxu0 %v268
      %282 = vmatprep.subr.bf16.mxu0 0
      %283 = vmatpush1.bf16.msra.mxu0 %v267
      %284 = vmatprep.subr.bf16.mxu0 0
      %285 = vmatpush1.bf16.msra.mxu0 %v266
      %286 = vmatprep.subr.bf16.mxu0 0
      %287 = vmatpush1.bf16.msra.mxu0 %v265
      %288 = vmatprep.subr.bf16.mxu0 0
      %289 = vmatpush1.bf16.msra.mxu0 %v264
      %290 = vmatprep.subr.bf16.mxu0 0
      %291 = vmatpush1.bf16.msra.mxu0 %v263
      %292 = vmatprep.subr.bf16.mxu0 0
      %293 = vmatpush1.bf16.msra.mxu0 %v262
      %294 = vmatprep.subr.bf16.mxu0 0
      %295 = vmatpush2.bf16.msra.mxu0 0
      %296 = vmatprep.subr.bf16.mxu0 0
      %297 = vmatpush2.bf16.msra.mxu0 0
      %298 = vmatprep.subr.bf16.mxu0 0
      %299 = vmatpush2.bf16.msra.mxu0 0
      %300 = vmatprep.subr.bf16.mxu0 0
      %301 = vmatpush2.bf16.msra.mxu0 0
      %302 = vmatprep.subr.bf16.mxu0 0
      %303 = vmatpush2.bf16.msra.mxu0 0
      %304 = vmatprep.subr.bf16.mxu0 0
      %305 = vmatpush2.bf16.msra.mxu0 0
      %306 = vmatprep.subr.bf16.mxu0 0
      %307 = vmatpush2.bf16.msra.mxu0 0
      %308 = vmatprep.subr.bf16.mxu0 0
      %309 = vmatpush2.bf16.msra.mxu0 0
      %310 = vmatprep.mubr.bf16.mxu0 0
      %311 = vmatmul.mubr.bf16.gmra.mxu0 %v222
      %v312 = vpop.f32.mrf.mxu0
      %v313 = vadd.f32 %v204, %v312
      %v314 = vpop.f32.mrf.mxu0
      %v315 = vpop.f32.mrf.mxu0
      %v316 = vadd.f32 %v204, %v315
      %v317 = vpop.f32.mrf.mxu0
      %318 = vmatprep.mubr.bf16.mxu0 0
      %319 = vmatmul.mubr.bf16.gmra.mxu0 %v223
      %v320 = vpop.f32.mrf.mxu0
      %v321 = vadd.f32 %v204, %v320
      %v322 = vpop.f32.mrf.mxu0
      %v323 = vpop.f32.mrf.mxu0
      %v324 = vadd.f32 %v204, %v323
      %v325 = vpop.f32.mrf.mxu0
      %326 = vmatprep.mubr.bf16.mxu0 0
      %327 = vmatmul.mubr.bf16.gmra.mxu0 %v224
      %v328 = vpop.f32.mrf.mxu0
      %v329 = vadd.f32 %v204, %v328
      %v330 = vpop.f32.mrf.mxu0
      %v331 = vpop.f32.mrf.mxu0
      %v332 = vadd.f32 %v204, %v331
      %v333 = vpop.f32.mrf.mxu0
      %334 = vmatprep.mubr.bf16.mxu0 0
      %335 = vmatmul.mubr.bf16.gmra.mxu0 %v225
      %v336 = vpop.f32.mrf.mxu0
      %v337 = vadd.f32 %v204, %v336
      %v338 = vpop.f32.mrf.mxu0
      %v339 = vpop.f32.mrf.mxu0
      %v340 = vadd.f32 %v204, %v339
      %v341 = vpop.f32.mrf.mxu0
      %342 = vdwg.mxu0
      %vm343 = vcmp.ge.f32.partialorder %v313, 0.0
      %vm344 = vcmp.ge.f32.partialorder %v316, 0.0
      %vm345 = vcmp.ge.f32.partialorder %v321, 0.0
      %vm346 = vcmp.ge.f32.partialorder %v324, 0.0
      %vm347 = vcmp.ge.f32.partialorder %v329, 0.0
      %vm348 = vcmp.ge.f32.partialorder %v332, 0.0
      %vm349 = vcmp.ge.f32.partialorder %v337, 0.0
      %vm350 = vcmp.ge.f32.partialorder %v340, 0.0
      %v351 = vmul.f32 %v313, 0.01
      %v352 = vmul.f32 %v316, 0.01
      %v353 = vmul.f32 %v321, 0.01
      %v354 = vmul.f32 %v324, 0.01
      %v355 = vmul.f32 %v329, 0.01
      %v356 = vmul.f32 %v332, 0.01
      %v357 = vmul.f32 %v337, 0.01
      %v358 = vmul.f32 %v340, 0.01
      %v359 = vsel %vm343, %v313, %v351
      %v360 = vsel %vm344, %v316, %v352
      %v361 = vsel %vm345, %v321, %v353
      %v362 = vsel %vm346, %v324, %v354
      %v363 = vsel %vm347, %v329, %v355
      %v364 = vsel %vm348, %v332, %v356
      %v365 = vsel %vm349, %v337, %v357
      %v366 = vsel %vm350, %v340, %v358
      %v367 = vpack.c.bf16 %v360, %v359
      %v368 = vpack.c.bf16 %v362, %v361
      %v369 = vpack.c.bf16 %v364, %v363
      %v370 = vpack.c.bf16 %v366, %v365
      %v375 = vunpack.c.l.b16 %v367
      %v376 = vunpack.c.h.b16 %v367
      %v377 = vunpack.c.l.b16 %v368
      %v378 = vunpack.c.h.b16 %v368
      %v379 = vunpack.c.l.b16 %v369
      %v380 = vunpack.c.h.b16 %v369
      %v381 = vunpack.c.l.b16 %v370
      %v382 = vunpack.c.h.b16 %v370
      %v383 = vpack.c.b16 %v375, %v375
      %v384 = vpack.c.b16 %v376, %v376
      %v385 = vpack.c.b16 %v377, %v377
      %v386 = vpack.c.b16 %v378, %v378
      %v387 = vpack.c.b16 %v379, %v379
      %v388 = vpack.c.b16 %v380, %v380
      %v389 = vpack.c.b16 %v381, %v381
      %v390 = vpack.c.b16 %v382, %v382
      %399 = vst [vmem:[%s172] sm:$0xf] %v383
      %400 = vst [vmem:[%s172 + $0x4] sm:$0xf] %v384
      %401 = vst [vmem:[%s172 + $0x8] sm:$0xf] %v385
      %402 = vst [vmem:[%s172 + $0xc] sm:$0xf] %v386
      %403 = vst [vmem:[%s172 + $0x10] sm:$0xf] %v387
      %404 = vst [vmem:[%s172 + $0x14] sm:$0xf] %v388
      %405 = vst [vmem:[%s172 + $0x18] sm:$0xf] %v389
      %406 = vst [vmem:[%s172 + $0x1c] sm:$0xf] %v390
      %s407 = smul.u32 8, %s14
      %p408 = scmp.lt.s32.totalorder %s407, 15
      %s409 = scalar_select %p408, %s407, 15
      %s410 = smul.addr %s409, 4
      %s411 = scalar_lea.vmem %s3, %s410
      // Predicated region
      $region33: #{_forward_nchw.2} parent=31 // pred_check
        %p412 = pneg %p100
      $region34: #{_forward_nchw.2} parent=31 // pred_check_branch
        %414 = sbr.rel (%p412) target = $region36
      $region35: #{_forward_nchw.2} parent=31 // pred_region
        %s415 = smul.u32 8, %s14
      $region36: #{_forward_nchw.2} parent=31 // pred_fallthru
        _
    $region32: #{_forward_nchw.2} parent=5 // pred_fallthru
      _
    %p416 = scmp.le.s32.totalorder 2, %s9
    // Predicated region
    $region37: #{_forward_nchw.2} parent=5 // pred_check
      %p417 = pneg %p416
    $region38: #{_forward_nchw.2} parent=5 // pred_check_branch
      %419 = sbr.rel (%p417) target = $region40
    $region39: #{_forward_nchw.2} parent=5 // pred_region
      %s420 = ssub.s32 %s9, 2
      // Predicated region
      $region41: #{_forward_nchw.2} parent=39 // pred_check
        %p421 = pneg %p106
      $region42: #{_forward_nchw.2} parent=39 // pred_check_branch
        %423 = sbr.rel (%p421) target = $region44
      $region43: #{_forward_nchw.2} parent=39 // pred_region
        %s424 = smul.u32 8, %s15
        %p425 = scmp.lt.s32.totalorder %s424, 15
        %s426 = scalar_select %p425, %s424, 15
        %s427 = smul.addr %s426, 4
        %s428 = scalar_lea.vmem %s3, %s427
      $region44: #{_forward_nchw.2} parent=39 // pred_fallthru
        _
    $region40: #{_forward_nchw.2} parent=5 // pred_fallthru
      _
  $region6: #{_forward_nchw.2} parent=0 // loop_footer
    %s13 = sadd.s32 1, %s9
  $region7: #{_forward_nchw.2} parent=0 // loop_footer_branch
    %8 = sbr.rel target = $region3
  $region8: #{_forward_nchw.2} parent=0 // loop_exit
    _

// kernel: _forward_nchw.3
$region0: #{_forward_nchw.3}
  #allocation0 [shape = 'u32[]', space=smem, size = 0x4, offset = 0x4, fixed_abs, tag = 'smem constant byte address 0x4 - core index']
  #allocation1 [shape = 'u32[144,128]{1,0:T(1,128)}', space=vmem, size = 0x12000, scoped, tag = 'internal scratch']
  %s0 = inlined_call_operand.vmem [shape: bf16[32,256], index: 0, kind: input, shape index: {}]
  %s1 = inlined_call_operand.vmem [shape: bf16[256,128], index: 1, kind: input, shape index: {}]
  %s2 = inlined_call_operand.vmem [shape: f32[1,128], index: 2, kind: input, shape index: {}]
  %s3 = inlined_call_operand.hbm [shape: f32[32,128], index: 3, kind: output, shape index: {}]
  %s4 = sld [smem:[#allocation0]]
  $region45: #{_forward_nchw.3} parent=0
    _
  %s6 = ssub.s32 1, %s4
  %s7 = scalar_select 0, %s6, %s4
  $region1: #{_forward_nchw.3} parent=0
    #allocation2 [shape = 'u8[16384]{0}', space=vmem, size = 0x4000, scoped, tag = 'output window, operand 0']
    #allocation3 [shape = 's32[2]{0}', space=sflag, size = 0x8, scoped, tag = 'scoped memory for _forward_nchw.3']
    %8 = vsyncpa [#allocation3], 0
    %s9 = scalar_lea.sflag [#allocation3], 1
    %10 = vsyncpa %s9, 0
    loop: start=0, step=1, limit=4
    $region2: #{_forward_nchw.3} parent=1 // loop_pre_header
      _
    $region3: #{_forward_nchw.3} parent=1 // loop_header
      %s12 = sphi 0, %s16
      %p13 = scmp.ge.s32.totalorder %s12, 4
      %s22 = sphi 0, %s24
      %s25 = sphi 0, %s22
      %s26 = sphi 0, %s25
      %s42 = sphi 0, %s26
      %s46 = sphi 0, %s46
      %s48 = sphi 0, %s46
      %s49 = sphi 0, %s48
      %s63 = sphi 0, %s49
      %s67 = sphi 0, %s67
      %s69 = sphi 0, %s67
      %s70 = sphi 0, %s69
      %s84 = sphi 0, %s70
      %s90 = sphi 0, %s92
      %s93 = sphi 0, %s90
      %s94 = sphi 0, %s93
      %s110 = sphi 0, %s94
    $region4: #{_forward_nchw.3} parent=1 // loop_header_branch
      %15 = sbr.rel (%p13) target = $region8
    $region5: #{_forward_nchw.3} parent=1 // loop_body
      %s17 = ssub.s32 %s12, 1
      %s18 = ssub.s32 %s12, 2
      %s19 = sadd.s32 %s12, 1
      %s20 = ssub.s32 %s12, %s19
      %p21 = scmp.eq.s32.totalorder %s20, 0
      %s23 = sadd.s32 %s22, 1
      %s24 = scalar_select %p21, %s22, %s23
      %p27 = pneg %p21
      %p28 = scmp.eq.s32.totalorder %s12, 1
      %p29 = por %p27, %p28
      %p30 = scmp.ne.s32.totalorder %s22, %s25
      %p31 = scmp.eq.s32.totalorder %s12, 0
      %p32 = por %p30, %p31
      %p33 = scmp.ne.s32.totalorder %s22, %s25
      %p34 = scmp.eq.s32.totalorder %s17, 1
      %p35 = por %p33, %p34
      %p36 = scmp.ne.s32.totalorder %s25, %s26
      %p37 = scmp.eq.s32.totalorder %s17, 0
      %p38 = por %p36, %p37
      %p39 = scmp.ne.s32.totalorder %s25, %s26
      %p40 = scmp.eq.s32.totalorder %s18, 1
      %p41 = por %p39, %p40
      %p43 = scmp.ne.s32.totalorder %s26, %s42
      %p44 = scmp.eq.s32.totalorder %s18, 0
      %p45 = por %p43, %p44
      %s47 = sadd.s32 %s46, 1
      %p50 = scmp.eq.s32.totalorder %s12, 1
      %p51 = scmp.ne.s32.totalorder %s46, %s48
      %p52 = scmp.eq.s32.totalorder %s12, 0
      %p53 = por %p51, %p52
      %p54 = scmp.ne.s32.totalorder %s46, %s48
      %p55 = scmp.eq.s32.totalorder %s17, 1
      %p56 = por %p54, %p55
      %p57 = scmp.ne.s32.totalorder %s48, %s49
      %p58 = scmp.eq.s32.totalorder %s17, 0
      %p59 = por %p57, %p58
      %p60 = scmp.ne.s32.totalorder %s48, %s49
      %p61 = scmp.eq.s32.totalorder %s18, 1
      %p62 = por %p60, %p61
      %p64 = scmp.ne.s32.totalorder %s49, %s63
      %p65 = scmp.eq.s32.totalorder %s18, 0
      %p66 = por %p64, %p65
      %s68 = sadd.s32 %s67, 1
      %p71 = scmp.eq.s32.totalorder %s12, 1
      %p72 = scmp.ne.s32.totalorder %s67, %s69
      %p73 = scmp.eq.s32.totalorder %s12, 0
      %p74 = por %p72, %p73
      %p75 = scmp.ne.s32.totalorder %s67, %s69
      %p76 = scmp.eq.s32.totalorder %s17, 1
      %p77 = por %p75, %p76
      %p78 = scmp.ne.s32.totalorder %s69, %s70
      %p79 = scmp.eq.s32.totalorder %s17, 0
      %p80 = por %p78, %p79
      %p81 = scmp.ne.s32.totalorder %s69, %s70
      %p82 = scmp.eq.s32.totalorder %s18, 1
      %p83 = por %p81, %p82
      %p85 = scmp.ne.s32.totalorder %s70, %s84
      %p86 = scmp.eq.s32.totalorder %s18, 0
      %p87 = por %p85, %p86
      %s88 = ssub.s32 %s12, %s19
      %p89 = scmp.eq.s32.totalorder %s88, 0
      %s91 = sadd.s32 %s90, 1
      %s92 = scalar_select %p89, %s90, %s91
      %p95 = pneg %p89
      %p96 = scmp.eq.s32.totalorder %s12, 1
      %p97 = por %p95, %p96
      %p98 = scmp.ne.s32.totalorder %s90, %s93
      %p99 = scmp.eq.s32.totalorder %s12, 0
      %p100 = por %p98, %p99
      %p101 = scmp.ne.s32.totalorder %s90, %s93
      %p102 = scmp.eq.s32.totalorder %s17, 1
      %p103 = por %p101, %p102
      %p104 = scmp.ne.s32.totalorder %s93, %s94
      %p105 = scmp.eq.s32.totalorder %s17, 0
      %p106 = por %p104, %p105
      %p107 = scmp.ne.s32.totalorder %s93, %s94
      %p108 = scmp.eq.s32.totalorder %s18, 1
      %p109 = por %p107, %p108
      %p111 = scmp.ne.s32.totalorder %s94, %s110
      %p112 = scmp.eq.s32.totalorder %s18, 0
      %p113 = por %p111, %p112
      %p114 = scmp.le.s32.totalorder 1, %s12
      %p115 = scmp.lt.s32.totalorder %s12, 3
      %p116 = pnand %p114, %p115
      %p117 = pneg %p116
      // Predicated region
      $region9: #{_forward_nchw.3} parent=5 // pred_check
        _
      $region10: #{_forward_nchw.3} parent=5 // pred_check_branch
        %119 = sbr.rel (%p116) target = $region12
      $region11: #{_forward_nchw.3} parent=5 // pred_region
        %s120 = ssub.s32 %s12, 1
        // Predicated region
        $region13: #{_forward_nchw.3} parent=11 // pred_check
          %p121 = pneg %p59
        $region14: #{_forward_nchw.3} parent=11 // pred_check_branch
          %123 = sbr.rel (%p121) target = $region16
        $region15: #{_forward_nchw.3} parent=11 // pred_region
          _
        $region16: #{_forward_nchw.3} parent=11 // pred_fallthru
          _
        // Predicated region
        $region17: #{_forward_nchw.3} parent=11 // pred_check
          %p124 = pneg %p80
        $region18: #{_forward_nchw.3} parent=11 // pred_check_branch
          %126 = sbr.rel (%p124) target = $region20
        $region19: #{_forward_nchw.3} parent=11 // pred_region
          _
        $region20: #{_forward_nchw.3} parent=11 // pred_fallthru
          _
      $region12: #{_forward_nchw.3} parent=5 // pred_fallthru
        _
      %p127 = scmp.lt.s32.totalorder %s12, 2
      // Predicated region
      $region21: #{_forward_nchw.3} parent=5 // pred_check
        %p128 = pneg %p127
      $region22: #{_forward_nchw.3} parent=5 // pred_check_branch
        %130 = sbr.rel (%p128) target = $region24
      $region23: #{_forward_nchw.3} parent=5 // pred_region
        // Predicated region
        $region25: #{_forward_nchw.3} parent=23 // pred_check
          %p131 = pneg %p32
        $region26: #{_forward_nchw.3} parent=23 // pred_check_branch
          %133 = sbr.rel (%p131) target = $region28
        $region27: #{_forward_nchw.3} parent=23 // pred_region
          %s134 = smul.u32 2, %s12
          %p135 = scmp.lt.s32.totalorder %s134, 3
          %s136 = scalar_select %p135, %s134, 3
          %s137 = smul.addr %s136, 2
          %s138 = smul.addr %s137, 4
          %s139 = scalar_lea.vmem %s0, %s138
          %s140 = smul.u32 2, %s12
        $region28: #{_forward_nchw.3} parent=23 // pred_fallthru
          _
      $region24: #{_forward_nchw.3} parent=5 // pred_fallthru
        _
      %p141 = scmp.le.s32.totalorder 1, %s12
      %p142 = scmp.lt.s32.totalorder %s12, 3
      %p143 = pnand %p141, %p142
      %p144 = pneg %p143
      // Predicated region
      $region29: #{_forward_nchw.3} parent=5 // pred_check
        _
      $region30: #{_forward_nchw.3} parent=5 // pred_check_branch
        %146 = sbr.rel (%p143) target = $region32
      $region31: #{_forward_nchw.3} parent=5 // pred_region
        %s147 = ssub.s32 %s12, 1
        %s148 = smul.u32 2, %s17
        %p149 = scmp.lt.s32.totalorder %s148, 3
        %s150 = scalar_select %p149, %s148, 3
        %s151 = smul.addr %s150, 2
        %s152 = smul.addr %s151, 4
        %s153 = scalar_lea.vmem %s0, %s152
        %p154 = pneg %p38
        %p155 = pneg %p35
        %p156 = pneg %p59
        %p157 = pneg %p56
        %p158 = pneg %p80
        %p159 = pneg %p77
        %p160 = pneg %p106
        %p161 = pneg %p103
        %s162 = sand.u32 %s93, 1
        %s163 = scalar_lea.sflag [#allocation3], %s162
        %s164 = sand.u32 %s93, 1
        %s165 = smul.addr %s164, 16
        %s166 = scalar_lea.vmem [#allocation2], %s165
        %s167 = smul.u32 2, %s17
        %p168 = scmp.lt.s32.totalorder %s167, 3
        %s169 = scalar_select %p168, %s167, 3
        %s170 = smul.addr %s169, 2
        %s171 = smul.addr %s170, 4
        %s172 = scalar_lea.vmem %s0, %s171
        %s173 = smul.u32 2, %s17
        %s174 = smul.u32 2, %s17
        %v176 = vld [vmem:[%s172] sm:$0xff]
        %v177 = vld [vmem:[%s172 + $0x8] sm:$0xff]
        %v178 = vld [vmem:[%s1] sm:$0xf]
        %v179 = vld [vmem:[%s1 + $0x4] sm:$0xf]
        %v180 = vld [vmem:[%s1 + $0x8] sm:$0xf]
        %v181 = vld [vmem:[%s1 + $0xc] sm:$0xf]
        %v182 = vld [vmem:[%s1 + $0x10] sm:$0xf]
        %v183 = vld [vmem:[%s1 + $0x14] sm:$0xf]
        %v184 = vld [vmem:[%s1 + $0x18] sm:$0xf]
        %v185 = vld [vmem:[%s1 + $0x1c] sm:$0xf]
        %v186 = vld [vmem:[%s1 + $0x20] sm:$0xf]
        %v187 = vld [vmem:[%s1 + $0x24] sm:$0xf]
        %v188 = vld [vmem:[%s1 + $0x28] sm:$0xf]
        %v189 = vld [vmem:[%s1 + $0x2c] sm:$0xf]
        %v190 = vld [vmem:[%s1 + $0x30] sm:$0xf]
        %v191 = vld [vmem:[%s1 + $0x34] sm:$0xf]
        %v192 = vld [vmem:[%s1 + $0x38] sm:$0xf]
        %v193 = vld [vmem:[%s1 + $0x3c] sm:$0xf]
        %v194 = vld [vmem:[%s1 + $0x40] sm:$0xf]
        %v195 = vld [vmem:[%s1 + $0x44] sm:$0xf]
        %v196 = vld [vmem:[%s1 + $0x48] sm:$0xf]
        %v197 = vld [vmem:[%s1 + $0x4c] sm:$0xf]
        %v198 = vld [vmem:[%s1 + $0x50] sm:$0xf]
        %v199 = vld [vmem:[%s1 + $0x54] sm:$0xf]
        %v200 = vld [vmem:[%s1 + $0x58] sm:$0xf]
        %v201 = vld [vmem:[%s1 + $0x5c] sm:$0xf]
        %v202 = vld [vmem:[%s1 + $0x60] sm:$0xf]
        %v203 = vld [vmem:[%s1 + $0x64] sm:$0xf]
        %v204 = vld [vmem:[%s1 + $0x68] sm:$0xf]
        %v205 = vld [vmem:[%s1 + $0x6c] sm:$0xf]
        %v206 = vld [vmem:[%s1 + $0x70] sm:$0xf]
        %v207 = vld [vmem:[%s1 + $0x74] sm:$0xf]
        %v208 = vld [vmem:[%s1 + $0x78] sm:$0xf]
        %v209 = vld [vmem:[%s1 + $0x7c] sm:$0xf]
        %v210 = vld [vmem:[%s2] sm:$0x1]
        %v212 = vlaneseq
        %v213 = vshrl.u32 %v212, 7
        %v214 = vsub.s32 0, %v213
        %v215 = vrot.slane %v210, %v214
        %v219 = vunpack.c.l.b16 %v176
        %v220 = vunpack.c.h.b16 %v176
        %v221 = vunpack.c.l.b16 %v177
        %v222 = vunpack.c.h.b16 %v177
        %v223 = vpack.c.b16 %v221, %v219
        %v224 = vpack.c.b16 %v222, %v220
        %v259 = vunpack.c.l.b16 %v178
        %v260 = vunpack.c.l.b16 %v179
        %v261 = vunpack.c.l.b16 %v180
        %v262 = vunpack.c.l.b16 %v181
        %v263 = vunpack.c.l.b16 %v182
        %v264 = vunpack.c.l.b16 %v183
        %v265 = vunpack.c.l.b16 %v184
        %v266 = vunpack.c.l.b16 %v185
        %v267 = vunpack.c.l.b16 %v186
        %v268 = vunpack.c.l.b16 %v187
        %v269 = vunpack.c.l.b16 %v188
        %v270 = vunpack.c.l.b16 %v189
        %v271 = vunpack.c.l.b16 %v190
        %v272 = vunpack.c.l.b16 %v191
        %v273 = vunpack.c.l.b16 %v192
        %v274 = vunpack.c.l.b16 %v193
        %v275 = vunpack.c.l.b16 %v194
        %v276 = vunpack.c.l.b16 %v195
        %v277 = vunpack.c.l.b16 %v196
        %v278 = vunpack.c.l.b16 %v197
        %v279 = vunpack.c.l.b16 %v198
        %v280 = vunpack.c.l.b16 %v199
        %v281 = vunpack.c.l.b16 %v200
        %v282 = vunpack.c.l.b16 %v201
        %v283 = vunpack.c.l.b16 %v202
        %v284 = vunpack.c.l.b16 %v203
        %v285 = vunpack.c.l.b16 %v204
        %v286 = vunpack.c.l.b16 %v205
        %v287 = vunpack.c.l.b16 %v206
        %v288 = vunpack.c.l.b16 %v207
        %v289 = vunpack.c.l.b16 %v208
        %v290 = vunpack.c.l.b16 %v209
        %v291 = vpack.c.b16 %v260, %v259
        %v292 = vpack.c.b16 %v262, %v261
        %v293 = vpack.c.b16 %v264, %v263
        %v294 = vpack.c.b16 %v266, %v265
        %v295 = vpack.c.b16 %v268, %v267
        %v296 = vpack.c.b16 %v270, %v269
        %v297 = vpack.c.b16 %v272, %v271
        %v298 = vpack.c.b16 %v274, %v273
        %v299 = vpack.c.b16 %v276, %v275
        %v300 = vpack.c.b16 %v278, %v277
        %v301 = vpack.c.b16 %v280, %v279
        %v302 = vpack.c.b16 %v282, %v281
        %v303 = vpack.c.b16 %v284, %v283
        %v304 = vpack.c.b16 %v286, %v285
        %v305 = vpack.c.b16 %v288, %v287
        %v306 = vpack.c.b16 %v290, %v289
        %323 = vmatprep.subr.bf16.mxu0 0
        %324 = vmatpush1.bf16.msra.mxu0 %v298
        %325 = vmatprep.subr.bf16.mxu0 0
        %326 = vmatpush1.bf16.msra.mxu0 %v297
        %327 = vmatprep.subr.bf16.mxu0 0
        %328 = vmatpush1.bf16.msra.mxu0 %v296
        %329 = vmatprep.subr.bf16.mxu0 0
        %330 = vmatpush1.bf16.msra.mxu0 %v295
        %331 = vmatprep.subr.bf16.mxu0 0
        %332 = vmatpush1.bf16.msra.mxu0 %v294
        %333 = vmatprep.subr.bf16.mxu0 0
        %334 = vmatpush1.bf16.msra.mxu0 %v293
        %335 = vmatprep.subr.bf16.mxu0 0
        %336 = vmatpush1.bf16.msra.mxu0 %v292
        %337 = vmatprep.subr.bf16.mxu0 0
        %338 = vmatpush1.bf16.msra.mxu0 %v291
        %339 = vmatprep.subr.bf16.mxu0 0
        %340 = vmatpush2.bf16.msra.mxu0 %v306
        %341 = vmatprep.subr.bf16.mxu0 0
        %342 = vmatpush2.bf16.msra.mxu0 %v305
        %343 = vmatprep.subr.bf16.mxu0 0
        %344 = vmatpush2.bf16.msra.mxu0 %v304
        %345 = vmatprep.subr.bf16.mxu0 0
        %346 = vmatpush2.bf16.msra.mxu0 %v303
        %347 = vmatprep.subr.bf16.mxu0 0
        %348 = vmatpush2.bf16.msra.mxu0 %v302
        %349 = vmatprep.subr.bf16.mxu0 0
        %350 = vmatpush2.bf16.msra.mxu0 %v301
        %351 = vmatprep.subr.bf16.mxu0 0
        %352 = vmatpush2.bf16.msra.mxu0 %v300
        %353 = vmatprep.subr.bf16.mxu0 0
        %354 = vmatpush2.bf16.msra.mxu0 %v299
        %355 = vmatprep.mubr.bf16.mxu0 %v224
        %356 = vmatmul.mubr.bf16.gmra.mxu0 %v223
        %v357 = vpop.f32.mrf.mxu0
        %v358 = vadd.f32 %v215, %v357
        %v359 = vpop.f32.mrf.mxu0
        %v360 = vpop.f32.mrf.mxu0
        %v361 = vadd.f32 %v215, %v360
        %v362 = vpop.f32.mrf.mxu0
        %363 = vdwg.mxu0
        %vm364 = vcmp.ge.f32.partialorder %v358, 0.0
        %vm365 = vcmp.ge.f32.partialorder %v361, 0.0
        %v366 = vmul.f32 %v358, 0.01
        %v367 = vmul.f32 %v361, 0.01
        %v368 = vsel %vm364, %v358, %v366
        %v369 = vsel %vm365, %v361, %v367
        %370 = vst [vmem:[%s166] sm:$0xff] %v368
        %371 = vst [vmem:[%s166 + $0x8] sm:$0xff] %v369
        %s372 = sand.u32 %s93, 1
        %s373 = scalar_lea.sflag [#allocation3], %s372
        %s374 = sand.u32 %s93, 1
        %s375 = smul.addr %s374, 16
        %s376 = scalar_lea.vmem [#allocation2], %s375
        // Predicated region
        $region33: #{_forward_nchw.3} parent=31 // pred_check
          %p377 = pneg %p103
        $region34: #{_forward_nchw.3} parent=31 // pred_check_branch
          %379 = sbr.rel (%p377) target = $region36
        $region35: #{_forward_nchw.3} parent=31 // pred_region
          %s380 = smul.u32 2, %s17
          %s382 = ssub.s32 256, 256
          %383 = vsyncadd %s373, %s382
          %s384 = smul.addr %s380, 128
          %s385 = scalar_lea.hbm %s3, %s384
          %s386 = sshll.u32 %s376, 4
          %s387 = int_to_ptr.vmem [resolvable:$true] %s386
          %392 = dma.vmem_to_hbm [thread:$0]  %s387, 256, %s385, %s373, 128, 128, 8
        $region36: #{_forward_nchw.3} parent=31 // pred_fallthru
          _
      $region32: #{_forward_nchw.3} parent=5 // pred_fallthru
        _
      %p393 = scmp.le.s32.totalorder 2, %s12
      // Predicated region
      $region37: #{_forward_nchw.3} parent=5 // pred_check
        %p394 = pneg %p393
      $region38: #{_forward_nchw.3} parent=5 // pred_check_branch
        %396 = sbr.rel (%p394) target = $region40
      $region39: #{_forward_nchw.3} parent=5 // pred_region
        %s397 = ssub.s32 %s12, 2
        // Predicated region
        $region41: #{_forward_nchw.3} parent=39 // pred_check
          %p398 = pneg %p109
        $region42: #{_forward_nchw.3} parent=39 // pred_check_branch
          %400 = sbr.rel (%p398) target = $region44
        $region43: #{_forward_nchw.3} parent=39 // pred_region
          %s401 = sand.u32 %s94, 1
          %s402 = scalar_lea.sflag [#allocation3], %s401
          %s403 = sand.u32 %s94, 1
          %s404 = smul.addr %s403, 16
          %s405 = scalar_lea.vmem [#allocation2], %s404
          %406 = dma.done %s402, 256
        $region44: #{_forward_nchw.3} parent=39 // pred_fallthru
          _
      $region40: #{_forward_nchw.3} parent=5 // pred_fallthru
        _
    $region6: #{_forward_nchw.3} parent=1 // loop_footer
      %s16 = sadd.s32 1, %s12
    $region7: #{_forward_nchw.3} parent=1 // loop_footer_branch
      %11 = sbr.rel target = $region3
    $region8: #{_forward_nchw.3} parent=1 // loop_exit
      _
    %407 = vsyncpa [#allocation3], 1
    %s408 = scalar_lea.sflag [#allocation3], 1
    %409 = vsyncpa %s408, 1

</llo_original>
